<compile_context>
chip_gen: v6e
topology: v6e:2x2x1
jax: 0.10.0
libtpu: 0.0.40
codegen_flags: <defaults>
</compile_context>

<pallas_src>
import jax
import jax.numpy as jnp
from jax.experimental import pallas as pl
from jax.experimental.pallas import tpu as pltpu


def _linear_block_kernel(x_ref, w_ref, scale_ref, shift_ref, o_ref):
    # x_ref:     (nb, C_in, t_hw)   input tile (native dtype; NCHW, spatial on lanes)
    # w_ref:     (C_out, C_in)      bf16 conv weight (unscaled)
    # scale_ref: (C_out, 1)         f32 BN scale = gamma / sqrt(var + eps)
    # shift_ref: (C_out, 1)         f32 BN shift = beta - mean * scale
    # o_ref:     (nb, C_out, t_hw)  output tile (bf16, lane-dense)
    w = w_ref[...]
    scale = scale_ref[...]
    shift = shift_ref[...]
    nb = x_ref.shape[0]
    for b in range(nb):                          # static small unroll over batch block
        x_b = x_ref[b].astype(jnp.bfloat16)      # in-kernel VPU cast: free under DMA
        acc = jnp.dot(w, x_b, preferred_element_type=jnp.float32)   # (C_out, t_hw) f32
        o_ref[b] = (acc * scale + shift).astype(o_ref.dtype)


def _tpu_vmem_capacity():
    try:
        return int(pltpu.get_tpu_info().vmem_capacity_bytes)
    except Exception:
        return 128 << 20   # v5e/v6e default if the query is unavailable


def _valid_spatial_tiles(hw128, max_t):
    hi = min(hw128, max_t)
    return sorted((t for t in range(128, hi + 1, 128) if hw128 % t == 0), reverse=True)


def _divisors_desc(n):
    return [d for d in range(n, 0, -1) if n % d == 0]


def linear_block_forward(x_nchw, conv_w, bn_gamma, bn_beta, bn_mean, bn_var,
                         eps=1e-5, out_dtype=jnp.bfloat16, compute_dtype=jnp.bfloat16):
    """x_nchw: (N, C_in, H, W) any float dtype. conv_w: (C_out, C_in, 1, 1) PyTorch layout."""
    N, C_in, H, W = x_nchw.shape
    C_out = conv_w.shape[0]
    HW = H * W
    LANE = 128
    hw128 = -(-HW // LANE) * LANE

    it_x = jnp.dtype(x_nchw.dtype).itemsize
    it_o = jnp.dtype(out_dtype).itemsize
    it_c = jnp.dtype(compute_dtype).itemsize

    # ---- generation-aware limits -------------------------------------------------
    vmem_cap = _tpu_vmem_capacity()
    small_vmem = vmem_cap <= (64 << 20)                   # v7x: 64 MiB per TensorCore
    max_t_hw = 1024 if small_vmem else 4096
    budget = (24 << 20) if small_vmem else (40 << 20)     # live pipeline-buffer budget

    # ---- tile selection: t_hw divides hw128 (pad is zero or <128 elements) --------
    per_lane_bytes = 2 * (C_in * it_x + C_out * it_o)     # double-buffered x & out, per lane
    t_hw = 128
    for t in _valid_spatial_tiles(hw128, max_t_hw):
        if t * per_lane_bytes <= budget:
            t_hw = t
            break
    # Block several batch elements per grid step for small images.
    lane_target = max(t_hw, 1024 if small_vmem else 2048)
    nb = 1
    for d in _divisors_desc(N):
        if d * t_hw <= lane_target and d * t_hw * per_lane_bytes <= budget:
            nb = d
            break

    HW_pad = hw128                                        # t_hw divides hw128 by construction

    # ---- fold BatchNorm (inference) into per-channel scale/shift ------------------
    # Weight stays unscaled bf16; scale is applied in the f32 epilogue (tighter parity).
    scale = (bn_gamma / jnp.sqrt(bn_var + eps)).astype(jnp.float32).reshape(C_out, 1)
    shift = (bn_beta.astype(jnp.float32).reshape(C_out, 1)
             - bn_mean.astype(jnp.float32).reshape(C_out, 1) * scale)
    w_mat = conv_w.reshape(C_out, C_in).astype(compute_dtype)

    # ---- NCHW-native: flatten spatial only (free reshape), pad only the ragged tail
    x3 = x_nchw.reshape(N, C_in, HW)
    if HW_pad != HW:
        x3 = jnp.pad(x3, ((0, 0), (0, 0), (0, HW_pad - HW)))

    grid = (N // nb, HW_pad // t_hw)

    cost = pl.CostEstimate(
        flops=2 * N * HW_pad * C_in * C_out,
        transcendentals=0,
        bytes_accessed=(N * C_in * HW_pad * it_x + C_out * C_in * it_c
                        + 2 * C_out * 4 + N * C_out * HW_pad * it_o))

    step_bytes = nb * t_hw * per_lane_bytes               # already includes 2x double-buffer

    def _call(single_buffer_invariants):
        inv_kw = ({"pipeline_mode": pl.Buffered(1)} if single_buffer_invariants else {})
        w_bufs = 1 if single_buffer_invariants else 2
        resident = (w_bufs * C_out * C_in * it_c          # weight
                    + 2 * w_bufs * C_out * LANE * 4)      # scale + shift (lane-padded)
        vmem_limit = int(min(max(step_bytes + resident + (2 << 20), 8 << 20), 48 << 20))
        return pl.pallas_call(
            _linear_block_kernel,
            out_shape=jax.ShapeDtypeStruct((N, C_out, HW_pad), out_dtype),
            grid_spec=pltpu.PrefetchScalarGridSpec(
                num_scalar_prefetch=0,
                grid=grid,
                in_specs=[
                    pl.BlockSpec((nb, C_in, t_hw), lambda n, j: (n, 0, j)),
                    pl.BlockSpec((C_out, C_in), lambda n, j: (0, 0), **inv_kw),
                    pl.BlockSpec((C_out, 1), lambda n, j: (0, 0), **inv_kw),
                    pl.BlockSpec((C_out, 1), lambda n, j: (0, 0), **inv_kw),
                ],
                out_specs=pl.BlockSpec((nb, C_out, t_hw), lambda n, j: (n, 0, j)),
            ),
            compiler_params=pltpu.CompilerParams(
                dimension_semantics=("parallel", "parallel"),
                vmem_limit_bytes=vmem_limit),
            cost_estimate=cost,
        )(x3, w_mat, scale, shift)

    try:
        out = _call(True)    # single-buffer the grid-invariant operands (VMEM relief on v7x)
    except Exception:
        out = _call(False)   # fallback if pipeline_mode=pl.Buffered(1) is unsupported

    if HW_pad != HW:
        out = out[:, :, :HW]
    return out.reshape(N, C_out, H, W)


def reference_forward(x_nchw, conv_w, bn_gamma, bn_beta, bn_mean, bn_var, eps=1e-5):
    # Pure-JAX f32 reference: 1x1 conv (no bias) + inference BatchNorm2d.
    C_out, C_in = conv_w.shape[0], conv_w.shape[1]
    w_mat = conv_w.reshape(C_out, C_in)
    y = jnp.einsum('nchw,oc->nohw', x_nchw, w_mat)
    scale = (bn_gamma / jnp.sqrt(bn_var + eps)).reshape(1, C_out, 1, 1)
    shift = (bn_beta - bn_mean * bn_gamma / jnp.sqrt(bn_var + eps)).reshape(1, C_out, 1, 1)
    return y * scale + shift


if __name__ == "__main__":
    # TODO(synk): only the default Linear_block config (kernel=(1,1), stride=(1,1),
    # padding=(0,0), groups=1) is implemented; a general KxK / grouped / strided conv
    # would need an im2col or depthwise kernel variant.
    key = jax.random.PRNGKey(0)
    k1, k2, k3, k4, k5, k6 = jax.random.split(key, 6)

    N, C_in, H, W = 2, 32, 16, 16
    C_out = 64

    x = jax.random.normal(k1, (N, C_in, H, W), dtype=jnp.float32)
    conv_w = jax.random.normal(k2, (C_out, C_in, 1, 1), dtype=jnp.float32) * 0.1
    bn_gamma = jax.random.normal(k3, (C_out,), dtype=jnp.float32) * 0.1 + 1.0
    bn_beta = jax.random.normal(k4, (C_out,), dtype=jnp.float32) * 0.1
    bn_mean = jax.random.normal(k5, (C_out,), dtype=jnp.float32) * 0.1
    bn_var = jax.nn.softplus(jax.random.normal(k6, (C_out,), dtype=jnp.float32)) + 0.5

    out = linear_block_forward(x, conv_w, bn_gamma, bn_beta, bn_mean, bn_var)
    out = jax.block_until_ready(out)
    assert out.shape == (N, C_out, H, W)
    assert out.dtype == jnp.bfloat16
    out_f32 = out.astype(jnp.float32)

    eps = 1e-5
    scale = bn_gamma / jnp.sqrt(bn_var + eps)
    shift4 = (bn_beta - bn_mean * scale).reshape(1, C_out, 1, 1)

    # Tight check against a bf16-consistent reference (same rounding of x/w, f32 epilogue,
    # same bf16 output cast).
    w_bf = conv_w.reshape(C_out, C_in).astype(jnp.bfloat16).astype(jnp.float32)
    x_bf = x.astype(jnp.bfloat16).astype(jnp.float32)
    ref_bf = (jnp.einsum('nchw,oc->nohw', x_bf, w_bf) * scale.reshape(1, C_out, 1, 1)
              + shift4).astype(jnp.bfloat16).astype(jnp.float32)
    assert jnp.allclose(out_f32, ref_bf, atol=2e-2, rtol=2e-2)

    # Looser check against the pure-f32 PyTorch-equivalent reference
    # (difference is bf16 quantization of x / weight and the bf16 output cast).
    ref_f32 = reference_forward(x, conv_w, bn_gamma, bn_beta, bn_mean, bn_var)
    assert jnp.allclose(out_f32, ref_f32, atol=5e-2, rtol=5e-2)

    print("KERNEL_OK")
</pallas_src>

<mosaic_0001>
module attributes {stable_mosaic.version = 11 : i64} {
  func.func @_linear_block_kernel(%arg0: i32, %arg1: i32, %arg2: memref<2x32x256xf32, #tpu.memory_space<vmem>>, %arg3: memref<64x32xbf16, #tpu.memory_space<vmem>>, %arg4: memref<64x1xf32, #tpu.memory_space<vmem>>, %arg5: memref<64x1xf32, #tpu.memory_space<vmem>>, %arg6: memref<2x64x256xbf16, #tpu.memory_space<vmem>>) attributes {dimension_semantics = [#tpu.dimension_semantics<parallel>, #tpu.dimension_semantics<parallel>], iteration_bounds = array<i64: 1, 1>, scalar_prefetch = 0 : i64, scratch_operands = 0 : i64, tpu.core_type = #tpu.core_type<tc>, window_params = [{transform_indices = @transform_0, window_bounds = array<i64: 2, 32, 256>}, {pipeline_mode = #tpu.pipeline_mode<synchronous>, transform_indices = @transform_1, window_bounds = array<i64: 64, 32>}, {pipeline_mode = #tpu.pipeline_mode<synchronous>, transform_indices = @transform_2, window_bounds = array<i64: 64, 1>}, {pipeline_mode = #tpu.pipeline_mode<synchronous>, transform_indices = @transform_3, window_bounds = array<i64: 64, 1>}, {transform_indices = @transform_4, window_bounds = array<i64: 2, 64, 256>}]} {
    %c0 = arith.constant 0 : index
    %c0_0 = arith.constant 0 : index
    %0 = vector.load %arg3[%c0, %c0_0] : memref<64x32xbf16, #tpu.memory_space<vmem>>, vector<64x32xbf16>
    %c0_1 = arith.constant 0 : index
    %c0_2 = arith.constant 0 : index
    %1 = vector.load %arg4[%c0_1, %c0_2] : memref<64x1xf32, #tpu.memory_space<vmem>>, vector<64x1xf32>
    %c0_3 = arith.constant 0 : index
    %c0_4 = arith.constant 0 : index
    %2 = vector.load %arg5[%c0_3, %c0_4] : memref<64x1xf32, #tpu.memory_space<vmem>>, vector<64x1xf32>
    %c0_5 = arith.constant 0 : index
    %c0_6 = arith.constant 0 : index
    %c0_7 = arith.constant 0 : index
    %3 = vector.load %arg2[%c0_5, %c0_6, %c0_7] : memref<2x32x256xf32, #tpu.memory_space<vmem>>, vector<1x32x256xf32>
    %4 = vector.shape_cast %3 : vector<1x32x256xf32> to vector<32x256xf32>
    %5 = arith.truncf %4 : vector<32x256xf32> to vector<32x256xbf16>
    %cst = arith.constant dense<0.000000e+00> : vector<64x256xf32>
    %6 = tpu.matmul %0, %5, %cst {dimension_numbers = #tpu.dot_dimension_numbers<[1], [0], [0], [1], [0, 0, 1, 1], [], []>} : vector<64x32xbf16>, vector<32x256xbf16>, vector<64x256xf32> -> vector<64x256xf32>
    %7 = vector.broadcast %1 : vector<64x1xf32> to vector<64x256xf32>
    %8 = arith.mulf %6, %7 : vector<64x256xf32>
    %9 = vector.broadcast %2 : vector<64x1xf32> to vector<64x256xf32>
    %10 = arith.addf %8, %9 : vector<64x256xf32>
    %11 = arith.truncf %10 : vector<64x256xf32> to vector<64x256xbf16>
    %c0_8 = arith.constant 0 : index
    %c0_9 = arith.constant 0 : index
    %c0_10 = arith.constant 0 : index
    %12 = vector.load %arg6[%c0_8, %c0_9, %c0_10] : memref<2x64x256xbf16, #tpu.memory_space<vmem>>, vector<1x64x256xbf16>
    %13 = vector.shape_cast %12 : vector<1x64x256xbf16> to vector<64x256xbf16>
    %14 = vector.shape_cast %11 : vector<64x256xbf16> to vector<1x64x256xbf16>
    tpu.vector_store %arg6[%c0_8, %c0_9, %c0_10], %14 {strides = array<i32>} : memref<2x64x256xbf16, #tpu.memory_space<vmem>>, vector<1x64x256xbf16>,
    %c1 = arith.constant 1 : index
    %c0_11 = arith.constant 0 : index
    %c0_12 = arith.constant 0 : index
    %15 = vector.load %arg2[%c1, %c0_11, %c0_12] : memref<2x32x256xf32, #tpu.memory_space<vmem>>, vector<1x32x256xf32>
    %16 = vector.shape_cast %15 : vector<1x32x256xf32> to vector<32x256xf32>
    %17 = arith.truncf %16 : vector<32x256xf32> to vector<32x256xbf16>
    %cst_13 = arith.constant dense<0.000000e+00> : vector<64x256xf32>
    %18 = tpu.matmul %0, %17, %cst_13 {dimension_numbers = #tpu.dot_dimension_numbers<[1], [0], [0], [1], [0, 0, 1, 1], [], []>} : vector<64x32xbf16>, vector<32x256xbf16>, vector<64x256xf32> -> vector<64x256xf32>
    %19 = vector.broadcast %1 : vector<64x1xf32> to vector<64x256xf32>
    %20 = arith.mulf %18, %19 : vector<64x256xf32>
    %21 = vector.broadcast %2 : vector<64x1xf32> to vector<64x256xf32>
    %22 = arith.addf %20, %21 : vector<64x256xf32>
    %23 = arith.truncf %22 : vector<64x256xf32> to vector<64x256xbf16>
    %c1_14 = arith.constant 1 : index
    %c0_15 = arith.constant 0 : index
    %c0_16 = arith.constant 0 : index
    %24 = vector.load %arg6[%c1_14, %c0_15, %c0_16] : memref<2x64x256xbf16, #tpu.memory_space<vmem>>, vector<1x64x256xbf16>
    %25 = vector.shape_cast %24 : vector<1x64x256xbf16> to vector<64x256xbf16>
    %26 = vector.shape_cast %23 : vector<64x256xbf16> to vector<1x64x256xbf16>
    tpu.vector_store %arg6[%c1_14, %c0_15, %c0_16], %26 {strides = array<i32>} : memref<2x64x256xbf16, #tpu.memory_space<vmem>>, vector<1x64x256xbf16>,
    return
  }
  func.func @transform_0(%arg0: i32, %arg1: i32) -> (i32, i32, i32) {
    %c0_i32 = arith.constant 0 : i32
    %c0_i32_0 = arith.constant 0 : i32
    return %arg0, %c0_i32, %arg1 : i32, i32, i32
  }
  func.func @transform_1(%arg0: i32, %arg1: i32) -> (i32, i32) {
    %c0_i32 = arith.constant 0 : i32
    %c0_i32_0 = arith.constant 0 : i32
    %c0_i32_1 = arith.constant 0 : i32
    return %c0_i32, %c0_i32_0 : i32, i32
  }
  func.func @transform_2(%arg0: i32, %arg1: i32) -> (i32, i32) {
    %c0_i32 = arith.constant 0 : i32
    %c0_i32_0 = arith.constant 0 : i32
    %c0_i32_1 = arith.constant 0 : i32
    return %c0_i32, %c0_i32_0 : i32, i32
  }
  func.func @transform_3(%arg0: i32, %arg1: i32) -> (i32, i32) {
    %c0_i32 = arith.constant 0 : i32
    %c0_i32_0 = arith.constant 0 : i32
    %c0_i32_1 = arith.constant 0 : i32
    return %c0_i32, %c0_i32_0 : i32, i32
  }
  func.func @transform_4(%arg0: i32, %arg1: i32) -> (i32, i32, i32) {
    %c0_i32 = arith.constant 0 : i32
    %c0_i32_0 = arith.constant 0 : i32
    return %arg0, %c0_i32, %arg1 : i32, i32, i32
  }
}

module attributes {stable_mosaic.version = 11 : i64} {
  func.func @_linear_block_kernel(%arg0: i32, %arg1: i32, %arg2: memref<2x32x256xf32, #tpu.memory_space<vmem>>, %arg3: memref<64x32xbf16, #tpu.memory_space<vmem>>, %arg4: memref<64x1xf32, #tpu.memory_space<vmem>>, %arg5: memref<64x1xf32, #tpu.memory_space<vmem>>, %arg6: memref<2x64x256xbf16, #tpu.memory_space<vmem>>) attributes {dimension_semantics = [#tpu.dimension_semantics<parallel>, #tpu.dimension_semantics<parallel>], iteration_bounds = array<i64: 1, 1>, scalar_prefetch = 0 : i64, scratch_operands = 0 : i64, tpu.core_type = #tpu.core_type<tc>, window_params = [{transform_indices = @transform_0, window_bounds = array<i64: 2, 32, 256>}, {pipeline_mode = #tpu.pipeline_mode<synchronous>, transform_indices = @transform_1, window_bounds = array<i64: 64, 32>}, {pipeline_mode = #tpu.pipeline_mode<synchronous>, transform_indices = @transform_2, window_bounds = array<i64: 64, 1>}, {pipeline_mode = #tpu.pipeline_mode<synchronous>, transform_indices = @transform_3, window_bounds = array<i64: 64, 1>}, {transform_indices = @transform_4, window_bounds = array<i64: 2, 64, 256>}]} {
    %c0 = arith.constant 0 : index
    %c0_0 = arith.constant 0 : index
    %0 = vector.load %arg3[%c0, %c0_0] : memref<64x32xbf16, #tpu.memory_space<vmem>>, vector<64x32xbf16>
    %c0_1 = arith.constant 0 : index
    %c0_2 = arith.constant 0 : index
    %1 = vector.load %arg4[%c0_1, %c0_2] : memref<64x1xf32, #tpu.memory_space<vmem>>, vector<64x1xf32>
    %c0_3 = arith.constant 0 : index
    %c0_4 = arith.constant 0 : index
    %2 = vector.load %arg5[%c0_3, %c0_4] : memref<64x1xf32, #tpu.memory_space<vmem>>, vector<64x1xf32>
    %c0_5 = arith.constant 0 : index
    %c0_6 = arith.constant 0 : index
    %c0_7 = arith.constant 0 : index
    %3 = vector.load %arg2[%c0_5, %c0_6, %c0_7] : memref<2x32x256xf32, #tpu.memory_space<vmem>>, vector<1x32x256xf32>
    %4 = vector.shape_cast %3 : vector<1x32x256xf32> to vector<32x256xf32>
    %5 = arith.truncf %4 : vector<32x256xf32> to vector<32x256xbf16>
    %cst = arith.constant dense<0.000000e+00> : vector<64x256xf32>
    %6 = tpu.matmul %0, %5, %cst {dimension_numbers = #tpu.dot_dimension_numbers<[1], [0], [0], [1], [0, 0, 1, 1], [], []>} : vector<64x32xbf16>, vector<32x256xbf16>, vector<64x256xf32> -> vector<64x256xf32>
    %7 = vector.broadcast %1 : vector<64x1xf32> to vector<64x256xf32>
    %8 = arith.mulf %6, %7 : vector<64x256xf32>
    %9 = vector.broadcast %2 : vector<64x1xf32> to vector<64x256xf32>
    %10 = arith.addf %8, %9 : vector<64x256xf32>
    %11 = arith.truncf %10 : vector<64x256xf32> to vector<64x256xbf16>
    %c0_8 = arith.constant 0 : index
    %c0_9 = arith.constant 0 : index
    %c0_10 = arith.constant 0 : index
    %12 = vector.load %arg6[%c0_8, %c0_9, %c0_10] : memref<2x64x256xbf16, #tpu.memory_space<vmem>>, vector<1x64x256xbf16>
    %13 = vector.shape_cast %12 : vector<1x64x256xbf16> to vector<64x256xbf16>
    %14 = vector.shape_cast %11 : vector<64x256xbf16> to vector<1x64x256xbf16>
    tpu.vector_store %arg6[%c0_8, %c0_9, %c0_10], %14 {strides = array<i32>} : memref<2x64x256xbf16, #tpu.memory_space<vmem>>, vector<1x64x256xbf16>,
    %c1 = arith.constant 1 : index
    %c0_11 = arith.constant 0 : index
    %c0_12 = arith.constant 0 : index
    %15 = vector.load %arg2[%c1, %c0_11, %c0_12] : memref<2x32x256xf32, #tpu.memory_space<vmem>>, vector<1x32x256xf32>
    %16 = vector.shape_cast %15 : vector<1x32x256xf32> to vector<32x256xf32>
    %17 = arith.truncf %16 : vector<32x256xf32> to vector<32x256xbf16>
    %cst_13 = arith.constant dense<0.000000e+00> : vector<64x256xf32>
    %18 = tpu.matmul %0, %17, %cst_13 {dimension_numbers = #tpu.dot_dimension_numbers<[1], [0], [0], [1], [0, 0, 1, 1], [], []>} : vector<64x32xbf16>, vector<32x256xbf16>, vector<64x256xf32> -> vector<64x256xf32>
    %19 = vector.broadcast %1 : vector<64x1xf32> to vector<64x256xf32>
    %20 = arith.mulf %18, %19 : vector<64x256xf32>
    %21 = vector.broadcast %2 : vector<64x1xf32> to vector<64x256xf32>
    %22 = arith.addf %20, %21 : vector<64x256xf32>
    %23 = arith.truncf %22 : vector<64x256xf32> to vector<64x256xbf16>
    %c1_14 = arith.constant 1 : index
    %c0_15 = arith.constant 0 : index
    %c0_16 = arith.constant 0 : index
    %24 = vector.load %arg6[%c1_14, %c0_15, %c0_16] : memref<2x64x256xbf16, #tpu.memory_space<vmem>>, vector<1x64x256xbf16>
    %25 = vector.shape_cast %24 : vector<1x64x256xbf16> to vector<64x256xbf16>
    %26 = vector.shape_cast %23 : vector<64x256xbf16> to vector<1x64x256xbf16>
    tpu.vector_store %arg6[%c1_14, %c0_15, %c0_16], %26 {strides = array<i32>} : memref<2x64x256xbf16, #tpu.memory_space<vmem>>, vector<1x64x256xbf16>,
    return
  }
  func.func @transform_0(%arg0: i32, %arg1: i32) -> (i32, i32, i32) {
    %c0_i32 = arith.constant 0 : i32
    %c0_i32_0 = arith.constant 0 : i32
    return %arg0, %c0_i32, %arg1 : i32, i32, i32
  }
  func.func @transform_1(%arg0: i32, %arg1: i32) -> (i32, i32) {
    %c0_i32 = arith.constant 0 : i32
    %c0_i32_0 = arith.constant 0 : i32
    %c0_i32_1 = arith.constant 0 : i32
    return %c0_i32, %c0_i32_0 : i32, i32
  }
  func.func @transform_2(%arg0: i32, %arg1: i32) -> (i32, i32) {
    %c0_i32 = arith.constant 0 : i32
    %c0_i32_0 = arith.constant 0 : i32
    %c0_i32_1 = arith.constant 0 : i32
    return %c0_i32, %c0_i32_0 : i32, i32
  }
  func.func @transform_3(%arg0: i32, %arg1: i32) -> (i32, i32) {
    %c0_i32 = arith.constant 0 : i32
    %c0_i32_0 = arith.constant 0 : i32
    %c0_i32_1 = arith.constant 0 : i32
    return %c0_i32, %c0_i32_0 : i32, i32
  }
  func.func @transform_4(%arg0: i32, %arg1: i32) -> (i32, i32, i32) {
    %c0_i32 = arith.constant 0 : i32
    %c0_i32_0 = arith.constant 0 : i32
    return %arg0, %c0_i32, %arg1 : i32, i32, i32
  }
}

</mosaic_0001>

<llo_original>
// kernel: tpu_custom_call.1
$region0: #{tpu_custom_call.1}
  #allocation0 [shape = 'u32[]', space=smem, size = 0x4, offset = 0x4, fixed_abs, tag = 'smem constant byte address 0x4 - core index']
  #allocation1 [shape = 'u32[144,128]{1,0:T(1,128)}', space=vmem, size = 0x12000, scoped, tag = 'internal scratch']
  %s0 = inlined_call_operand.vmem [shape: f32[2,32,256], index: 0, kind: input, shape index: {}]
  %s1 = inlined_call_operand.vmem [shape: bf16[64,32], index: 1, kind: input, shape index: {}]
  %s2 = inlined_call_operand.vmem [shape: f32[64,1], index: 2, kind: input, shape index: {}]
  %s3 = inlined_call_operand.vmem [shape: f32[64,1], index: 3, kind: input, shape index: {}]
  %s4 = inlined_call_operand.hbm [shape: bf16[2,64,256], index: 4, kind: output, shape index: {}]
  %s5 = sld [smem:[#allocation0]]
  $region26: #{tpu_custom_call.1} parent=0
    _
  %s7 = ssub.s32 1, %s5
  %s8 = scalar_select 0, %s7, %s5
  $region1: #{tpu_custom_call.1} parent=0
    #allocation2 [shape = 'u8[65536]{0}', space=vmem, size = 0x10000, scoped, tag = 'output window, operand 0, single buffered']
    #allocation3 [shape = 's32[1]{0}', space=sflag, size = 0x4, scoped, tag = 'scoped memory for tpu_custom_call.1']
    %9 = vsyncpa [#allocation3], 0
    // Predicated region
    $region2: #{tpu_custom_call.1} parent=1 // pred_check
      _
    $region3: #{tpu_custom_call.1} parent=1 // pred_check_branch
      %11 = sbr.rel (0) target = $region5
    $region4: #{tpu_custom_call.1} parent=1 // pred_region
      _
    $region5: #{tpu_custom_call.1} parent=1 // pred_fallthru
      _
    // Predicated region
    $region6: #{tpu_custom_call.1} parent=1 // pred_check
      _
    $region7: #{tpu_custom_call.1} parent=1 // pred_check_branch
      %13 = sbr.rel (0) target = $region9
    $region8: #{tpu_custom_call.1} parent=1 // pred_region
      _
    $region9: #{tpu_custom_call.1} parent=1 // pred_fallthru
      _
    // Predicated region
    $region10: #{tpu_custom_call.1} parent=1 // pred_check
      _
    $region11: #{tpu_custom_call.1} parent=1 // pred_check_branch
      %15 = sbr.rel (0) target = $region13
    $region12: #{tpu_custom_call.1} parent=1 // pred_region
      _
    $region13: #{tpu_custom_call.1} parent=1 // pred_fallthru
      _
    // Predicated region
    $region14: #{tpu_custom_call.1} parent=1 // pred_check
      _
    $region15: #{tpu_custom_call.1} parent=1 // pred_check_branch
      %17 = sbr.rel (0) target = $region17
    $region16: #{tpu_custom_call.1} parent=1 // pred_region
      _
    $region17: #{tpu_custom_call.1} parent=1 // pred_fallthru
      _
    %v19 = vld [vmem:[%s1] sm:$0xf]
    %v20 = vld [vmem:[%s1 + $0x4] sm:$0xf]
    %v21 = vld [vmem:[%s1 + $0x8] sm:$0xf]
    %v22 = vld [vmem:[%s1 + $0xc] sm:$0xf]
    %v23 = vld [vmem:[%s1 + $0x10] sm:$0xf]
    %v24 = vld [vmem:[%s1 + $0x14] sm:$0xf]
    %v25 = vld [vmem:[%s1 + $0x18] sm:$0xf]
    %v26 = vld [vmem:[%s1 + $0x1c] sm:$0xf]
    %v27 = vld [vmem:[%s2] sm:$0xff]
    %v28 = vld [vmem:[%s2 + $0x8] sm:$0xff]
    %v29 = vld [vmem:[%s2 + $0x10] sm:$0xff]
    %v30 = vld [vmem:[%s2 + $0x18] sm:$0xff]
    %v31 = vld [vmem:[%s2 + $0x20] sm:$0xff]
    %v32 = vld [vmem:[%s2 + $0x28] sm:$0xff]
    %v33 = vld [vmem:[%s2 + $0x30] sm:$0xff]
    %v34 = vld [vmem:[%s2 + $0x38] sm:$0xff]
    %v35 = vld [vmem:[%s3] sm:$0xff]
    %v36 = vld [vmem:[%s3 + $0x8] sm:$0xff]
    %v37 = vld [vmem:[%s3 + $0x10] sm:$0xff]
    %v38 = vld [vmem:[%s3 + $0x18] sm:$0xff]
    %v39 = vld [vmem:[%s3 + $0x20] sm:$0xff]
    %v40 = vld [vmem:[%s3 + $0x28] sm:$0xff]
    %v41 = vld [vmem:[%s3 + $0x30] sm:$0xff]
    %v42 = vld [vmem:[%s3 + $0x38] sm:$0xff]
    %v43 = vld [vmem:[%s0] sm:$0xff]
    %v44 = vld [vmem:[%s0 + $0x8] sm:$0xff]
    %v45 = vld [vmem:[%s0 + $0x10] sm:$0xff]
    %v46 = vld [vmem:[%s0 + $0x18] sm:$0xff]
    %v47 = vld [vmem:[%s0 + $0x20] sm:$0xff]
    %v48 = vld [vmem:[%s0 + $0x28] sm:$0xff]
    %v49 = vld [vmem:[%s0 + $0x30] sm:$0xff]
    %v50 = vld [vmem:[%s0 + $0x38] sm:$0xff]
    %v51 = vpack.c.bf16 %v45, %v43
    %v52 = vpack.c.bf16 %v46, %v44
    %v53 = vpack.c.bf16 %v49, %v47
    %v54 = vpack.c.bf16 %v50, %v48
    %v63 = vunpack.c.l.b16 %v19
    %v64 = vunpack.c.l.b16 %v20
    %v65 = vunpack.c.l.b16 %v21
    %v66 = vunpack.c.l.b16 %v22
    %v67 = vunpack.c.l.b16 %v23
    %v68 = vunpack.c.l.b16 %v24
    %v69 = vunpack.c.l.b16 %v25
    %v70 = vunpack.c.l.b16 %v26
    %v71 = vpack.c.b16 %v64, %v63
    %v72 = vpack.c.b16 %v66, %v65
    %v73 = vpack.c.b16 %v68, %v67
    %v74 = vpack.c.b16 %v70, %v69
    %vm75 = vcmask 261120
    %v77 = vsel %vm75, %v71, 0
    %v80 = vsel %vm75, %v72, 0
    %v83 = vsel %vm75, %v73, 0
    %v86 = vsel %vm75, %v74, 0
    %88 = vmatprep.subr.bf16.mxu0 0
    %89 = vmatpush1.bf16.msra.mxu0 0
    %90 = vmatprep.subr.bf16.mxu0 0
    %91 = vmatpush1.bf16.msra.mxu0 0
    %92 = vmatprep.subr.bf16.mxu0 0
    %93 = vmatpush1.bf16.msra.mxu0 0
    %94 = vmatprep.subr.bf16.mxu0 0
    %95 = vmatpush1.bf16.msra.mxu0 0
    %96 = vmatprep.subr.bf16.mxu0 0
    %97 = vmatpush1.bf16.msra.mxu0 0
    %98 = vmatprep.subr.bf16.mxu0 0
    %99 = vmatpush1.bf16.msra.mxu0 0
    %100 = vmatprep.subr.bf16.mxu0 %v54
    %101 = vmatpush1.bf16.msra.mxu0 %v53
    %102 = vmatprep.subr.bf16.mxu0 %v52
    %103 = vmatpush1.bf16.msra.mxu0 %v51
    %104 = vmatprep.subr.bf16.mxu0 0
    %105 = vmatpush2.bf16.msra.mxu0 0
    %106 = vmatprep.subr.bf16.mxu0 0
    %107 = vmatpush2.bf16.msra.mxu0 0
    %108 = vmatprep.subr.bf16.mxu0 0
    %109 = vmatpush2.bf16.msra.mxu0 0
    %110 = vmatprep.subr.bf16.mxu0 0
    %111 = vmatpush2.bf16.msra.mxu0 0
    %112 = vmatprep.subr.bf16.mxu0 0
    %113 = vmatpush2.bf16.msra.mxu0 0
    %114 = vmatprep.subr.bf16.mxu0 0
    %115 = vmatpush2.bf16.msra.mxu0 0
    %116 = vmatprep.subr.bf16.mxu0 0
    %117 = vmatpush2.bf16.msra.mxu0 0
    %118 = vmatprep.subr.bf16.mxu0 0
    %119 = vmatpush2.bf16.msra.mxu0 0
    %120 = vmatprep.mubr.bf16.mxu0 0
    %121 = vmatmul.mubr.bf16.gmra.mxu0 %v77
    %v122 = vpop.f32.mrf.mxu0
    %v123 = vadd.f32 0.0, %v122
    %v124 = vpop.f32.mrf.mxu0
    %v125 = vadd.f32 0.0, %v124
    %v126 = vpop.f32.mrf.mxu0
    %v127 = vadd.f32 0.0, %v126
    %v128 = vpop.f32.mrf.mxu0
    %v129 = vadd.f32 0.0, %v128
    %130 = vmatprep.mubr.bf16.mxu0 0
    %131 = vmatmul.mubr.bf16.gmra.mxu0 %v80
    %v132 = vpop.f32.mrf.mxu0
    %v133 = vadd.f32 0.0, %v132
    %v134 = vpop.f32.mrf.mxu0
    %v135 = vadd.f32 0.0, %v134
    %v136 = vpop.f32.mrf.mxu0
    %v137 = vadd.f32 0.0, %v136
    %v138 = vpop.f32.mrf.mxu0
    %v139 = vadd.f32 0.0, %v138
    %140 = vmatprep.mubr.bf16.mxu0 0
    %141 = vmatmul.mubr.bf16.gmra.mxu0 %v83
    %v142 = vpop.f32.mrf.mxu0
    %v143 = vadd.f32 0.0, %v142
    %v144 = vpop.f32.mrf.mxu0
    %v145 = vadd.f32 0.0, %v144
    %v146 = vpop.f32.mrf.mxu0
    %v147 = vadd.f32 0.0, %v146
    %v148 = vpop.f32.mrf.mxu0
    %v149 = vadd.f32 0.0, %v148
    %150 = vmatprep.mubr.bf16.mxu0 0
    %151 = vmatmul.mubr.bf16.gmra.mxu0 %v86
    %v152 = vpop.f32.mrf.mxu0
    %v153 = vadd.f32 0.0, %v152
    %v154 = vpop.f32.mrf.mxu0
    %v155 = vadd.f32 0.0, %v154
    %v156 = vpop.f32.mrf.mxu0
    %v157 = vadd.f32 0.0, %v156
    %v158 = vpop.f32.mrf.mxu0
    %v159 = vadd.f32 0.0, %v158
    %160 = vdwg.mxu0
    %162 = vset.pattern.permute.xlu0 0
    %163 = vperm.xlu0 %162, %v27
    %v164 = vpop.permute.xlu0 %163
    %167 = vset.pattern.permute.xlu0 0
    %168 = vperm.xlu0 %167, %v28
    %v169 = vpop.permute.xlu0 %168
    %172 = vset.pattern.permute.xlu0 0
    %173 = vperm.xlu0 %172, %v29
    %v174 = vpop.permute.xlu0 %173
    %177 = vset.pattern.permute.xlu0 0
    %178 = vperm.xlu0 %177, %v30
    %v179 = vpop.permute.xlu0 %178
    %182 = vset.pattern.permute.xlu0 0
    %183 = vperm.xlu0 %182, %v31
    %v184 = vpop.permute.xlu0 %183
    %187 = vset.pattern.permute.xlu0 0
    %188 = vperm.xlu0 %187, %v32
    %v189 = vpop.permute.xlu0 %188
    %192 = vset.pattern.permute.xlu0 0
    %193 = vperm.xlu0 %192, %v33
    %v194 = vpop.permute.xlu0 %193
    %197 = vset.pattern.permute.xlu0 0
    %198 = vperm.xlu0 %197, %v34
    %v199 = vpop.permute.xlu0 %198
    %v201 = vmul.f32 %v123, %v164
    %v202 = vmul.f32 %v125, %v164
    %v203 = vmul.f32 %v127, %v169
    %v204 = vmul.f32 %v129, %v169
    %v205 = vmul.f32 %v133, %v174
    %v206 = vmul.f32 %v135, %v174
    %v207 = vmul.f32 %v137, %v179
    %v208 = vmul.f32 %v139, %v179
    %v209 = vmul.f32 %v143, %v184
    %v210 = vmul.f32 %v145, %v184
    %v211 = vmul.f32 %v147, %v189
    %v212 = vmul.f32 %v149, %v189
    %v213 = vmul.f32 %v153, %v194
    %v214 = vmul.f32 %v155, %v194
    %v215 = vmul.f32 %v157, %v199
    %v216 = vmul.f32 %v159, %v199
    %218 = vset.pattern.permute.xlu0 0
    %219 = vperm.xlu0 %218, %v35
    %v220 = vpop.permute.xlu0 %219
    %223 = vset.pattern.permute.xlu0 0
    %224 = vperm.xlu0 %223, %v36
    %v225 = vpop.permute.xlu0 %224
    %228 = vset.pattern.permute.xlu0 0
    %229 = vperm.xlu0 %228, %v37
    %v230 = vpop.permute.xlu0 %229
    %233 = vset.pattern.permute.xlu0 0
    %234 = vperm.xlu0 %233, %v38
    %v235 = vpop.permute.xlu0 %234
    %238 = vset.pattern.permute.xlu0 0
    %239 = vperm.xlu0 %238, %v39
    %v240 = vpop.permute.xlu0 %239
    %243 = vset.pattern.permute.xlu0 0
    %244 = vperm.xlu0 %243, %v40
    %v245 = vpop.permute.xlu0 %244
    %248 = vset.pattern.permute.xlu0 0
    %249 = vperm.xlu0 %248, %v41
    %v250 = vpop.permute.xlu0 %249
    %253 = vset.pattern.permute.xlu0 0
    %254 = vperm.xlu0 %253, %v42
    %v255 = vpop.permute.xlu0 %254
    %v257 = vadd.f32 %v201, %v220
    %v258 = vadd.f32 %v202, %v220
    %v259 = vadd.f32 %v203, %v225
    %v260 = vadd.f32 %v204, %v225
    %v261 = vadd.f32 %v205, %v230
    %v262 = vadd.f32 %v206, %v230
    %v263 = vadd.f32 %v207, %v235
    %v264 = vadd.f32 %v208, %v235
    %v265 = vadd.f32 %v209, %v240
    %v266 = vadd.f32 %v210, %v240
    %v267 = vadd.f32 %v211, %v245
    %v268 = vadd.f32 %v212, %v245
    %v269 = vadd.f32 %v213, %v250
    %v270 = vadd.f32 %v214, %v250
    %v271 = vadd.f32 %v215, %v255
    %v272 = vadd.f32 %v216, %v255
    %v273 = vpack.c.bf16 %v259, %v257
    %v274 = vpack.c.bf16 %v260, %v258
    %v275 = vpack.c.bf16 %v263, %v261
    %v276 = vpack.c.bf16 %v264, %v262
    %v277 = vpack.c.bf16 %v267, %v265
    %v278 = vpack.c.bf16 %v268, %v266
    %v279 = vpack.c.bf16 %v271, %v269
    %v280 = vpack.c.bf16 %v272, %v270
    %v289 = vunpack.c.l.b16 %v273
    %v290 = vunpack.c.l.b16 %v274
    %v291 = vunpack.c.h.b16 %v273
    %v292 = vunpack.c.h.b16 %v274
    %v293 = vunpack.c.l.b16 %v275
    %v294 = vunpack.c.l.b16 %v276
    %v295 = vunpack.c.h.b16 %v275
    %v296 = vunpack.c.h.b16 %v276
    %v297 = vunpack.c.l.b16 %v277
    %v298 = vunpack.c.l.b16 %v278
    %v299 = vunpack.c.h.b16 %v277
    %v300 = vunpack.c.h.b16 %v278
    %v301 = vunpack.c.l.b16 %v279
    %v302 = vunpack.c.l.b16 %v280
    %v303 = vunpack.c.h.b16 %v279
    %v304 = vunpack.c.h.b16 %v280
    %v305 = vpack.c.b16 %v290, %v289
    %v306 = vpack.c.b16 %v292, %v291
    %v307 = vpack.c.b16 %v294, %v293
    %v308 = vpack.c.b16 %v296, %v295
    %v309 = vpack.c.b16 %v298, %v297
    %v310 = vpack.c.b16 %v300, %v299
    %v311 = vpack.c.b16 %v302, %v301
    %v312 = vpack.c.b16 %v304, %v303
    %321 = vst [vmem:[#allocation2] sm:$0xff] %v305
    %322 = vst [vmem:[#allocation2 + $0x8] sm:$0xff] %v306
    %323 = vst [vmem:[#allocation2 + $0x10] sm:$0xff] %v307
    %324 = vst [vmem:[#allocation2 + $0x18] sm:$0xff] %v308
    %325 = vst [vmem:[#allocation2 + $0x20] sm:$0xff] %v309
    %326 = vst [vmem:[#allocation2 + $0x28] sm:$0xff] %v310
    %327 = vst [vmem:[#allocation2 + $0x30] sm:$0xff] %v311
    %328 = vst [vmem:[#allocation2 + $0x38] sm:$0xff] %v312
    %s329 = scalar_lea.vmem %s0, 64
    %v330 = vld [vmem:[%s329] sm:$0xff]
    %v331 = vld [vmem:[%s329 + $0x8] sm:$0xff]
    %v332 = vld [vmem:[%s329 + $0x10] sm:$0xff]
    %v333 = vld [vmem:[%s329 + $0x18] sm:$0xff]
    %v334 = vld [vmem:[%s329 + $0x20] sm:$0xff]
    %v335 = vld [vmem:[%s329 + $0x28] sm:$0xff]
    %v336 = vld [vmem:[%s329 + $0x30] sm:$0xff]
    %v337 = vld [vmem:[%s329 + $0x38] sm:$0xff]
    %v338 = vpack.c.bf16 %v332, %v330
    %v339 = vpack.c.bf16 %v333, %v331
    %v340 = vpack.c.bf16 %v336, %v334
    %v341 = vpack.c.bf16 %v337, %v335
    %342 = vmatprep.subr.bf16.mxu0 0
    %343 = vmatpush1.bf16.msra.mxu0 0
    %344 = vmatprep.subr.bf16.mxu0 0
    %345 = vmatpush1.bf16.msra.mxu0 0
    %346 = vmatprep.subr.bf16.mxu0 0
    %347 = vmatpush1.bf16.msra.mxu0 0
    %348 = vmatprep.subr.bf16.mxu0 0
    %349 = vmatpush1.bf16.msra.mxu0 0
    %350 = vmatprep.subr.bf16.mxu0 0
    %351 = vmatpush1.bf16.msra.mxu0 0
    %352 = vmatprep.subr.bf16.mxu0 0
    %353 = vmatpush1.bf16.msra.mxu0 0
    %354 = vmatprep.subr.bf16.mxu0 %v341
    %355 = vmatpush1.bf16.msra.mxu0 %v340
    %356 = vmatprep.subr.bf16.mxu0 %v339
    %357 = vmatpush1.bf16.msra.mxu0 %v338
    %358 = vmatprep.subr.bf16.mxu0 0
    %359 = vmatpush2.bf16.msra.mxu0 0
    %360 = vmatprep.subr.bf16.mxu0 0
    %361 = vmatpush2.bf16.msra.mxu0 0
    %362 = vmatprep.subr.bf16.mxu0 0
    %363 = vmatpush2.bf16.msra.mxu0 0
    %364 = vmatprep.subr.bf16.mxu0 0
    %365 = vmatpush2.bf16.msra.mxu0 0
    %366 = vmatprep.subr.bf16.mxu0 0
    %367 = vmatpush2.bf16.msra.mxu0 0
    %368 = vmatprep.subr.bf16.mxu0 0
    %369 = vmatpush2.bf16.msra.mxu0 0
    %370 = vmatprep.subr.bf16.mxu0 0
    %371 = vmatpush2.bf16.msra.mxu0 0
    %372 = vmatprep.subr.bf16.mxu0 0
    %373 = vmatpush2.bf16.msra.mxu0 0
    %374 = vmatprep.mubr.bf16.mxu0 0
    %375 = vmatmul.mubr.bf16.gmra.mxu0 %v77
    %v376 = vpop.f32.mrf.mxu0
    %v377 = vadd.f32 0.0, %v376
    %v378 = vpop.f32.mrf.mxu0
    %v379 = vadd.f32 0.0, %v378
    %v380 = vpop.f32.mrf.mxu0
    %v381 = vadd.f32 0.0, %v380
    %v382 = vpop.f32.mrf.mxu0
    %v383 = vadd.f32 0.0, %v382
    %384 = vmatprep.mubr.bf16.mxu0 0
    %385 = vmatmul.mubr.bf16.gmra.mxu0 %v80
    %v386 = vpop.f32.mrf.mxu0
    %v387 = vadd.f32 0.0, %v386
    %v388 = vpop.f32.mrf.mxu0
    %v389 = vadd.f32 0.0, %v388
    %v390 = vpop.f32.mrf.mxu0
    %v391 = vadd.f32 0.0, %v390
    %v392 = vpop.f32.mrf.mxu0
    %v393 = vadd.f32 0.0, %v392
    %394 = vmatprep.mubr.bf16.mxu0 0
    %395 = vmatmul.mubr.bf16.gmra.mxu0 %v83
    %v396 = vpop.f32.mrf.mxu0
    %v397 = vadd.f32 0.0, %v396
    %v398 = vpop.f32.mrf.mxu0
    %v399 = vadd.f32 0.0, %v398
    %v400 = vpop.f32.mrf.mxu0
    %v401 = vadd.f32 0.0, %v400
    %v402 = vpop.f32.mrf.mxu0
    %v403 = vadd.f32 0.0, %v402
    %404 = vmatprep.mubr.bf16.mxu0 0
    %405 = vmatmul.mubr.bf16.gmra.mxu0 %v86
    %v406 = vpop.f32.mrf.mxu0
    %v407 = vadd.f32 0.0, %v406
    %v408 = vpop.f32.mrf.mxu0
    %v409 = vadd.f32 0.0, %v408
    %v410 = vpop.f32.mrf.mxu0
    %v411 = vadd.f32 0.0, %v410
    %v412 = vpop.f32.mrf.mxu0
    %v413 = vadd.f32 0.0, %v412
    %414 = vdwg.mxu0
    %v415 = vmul.f32 %v377, %v164
    %v416 = vmul.f32 %v379, %v164
    %v417 = vmul.f32 %v381, %v169
    %v418 = vmul.f32 %v383, %v169
    %v419 = vmul.f32 %v387, %v174
    %v420 = vmul.f32 %v389, %v174
    %v421 = vmul.f32 %v391, %v179
    %v422 = vmul.f32 %v393, %v179
    %v423 = vmul.f32 %v397, %v184
    %v424 = vmul.f32 %v399, %v184
    %v425 = vmul.f32 %v401, %v189
    %v426 = vmul.f32 %v403, %v189
    %v427 = vmul.f32 %v407, %v194
    %v428 = vmul.f32 %v409, %v194
    %v429 = vmul.f32 %v411, %v199
    %v430 = vmul.f32 %v413, %v199
    %v431 = vadd.f32 %v415, %v220
    %v432 = vadd.f32 %v416, %v220
    %v433 = vadd.f32 %v417, %v225
    %v434 = vadd.f32 %v418, %v225
    %v435 = vadd.f32 %v419, %v230
    %v436 = vadd.f32 %v420, %v230
    %v437 = vadd.f32 %v421, %v235
    %v438 = vadd.f32 %v422, %v235
    %v439 = vadd.f32 %v423, %v240
    %v440 = vadd.f32 %v424, %v240
    %v441 = vadd.f32 %v425, %v245
    %v442 = vadd.f32 %v426, %v245
    %v443 = vadd.f32 %v427, %v250
    %v444 = vadd.f32 %v428, %v250
    %v445 = vadd.f32 %v429, %v255
    %v446 = vadd.f32 %v430, %v255
    %v447 = vpack.c.bf16 %v433, %v431
    %v448 = vpack.c.bf16 %v434, %v432
    %v449 = vpack.c.bf16 %v437, %v435
    %v450 = vpack.c.bf16 %v438, %v436
    %v451 = vpack.c.bf16 %v441, %v439
    %v452 = vpack.c.bf16 %v442, %v440
    %v453 = vpack.c.bf16 %v445, %v443
    %v454 = vpack.c.bf16 %v446, %v444
    %v463 = vunpack.c.l.b16 %v447
    %v464 = vunpack.c.l.b16 %v448
    %v465 = vunpack.c.h.b16 %v447
    %v466 = vunpack.c.h.b16 %v448
    %v467 = vunpack.c.l.b16 %v449
    %v468 = vunpack.c.l.b16 %v450
    %v469 = vunpack.c.h.b16 %v449
    %v470 = vunpack.c.h.b16 %v450
    %v471 = vunpack.c.l.b16 %v451
    %v472 = vunpack.c.l.b16 %v452
    %v473 = vunpack.c.h.b16 %v451
    %v474 = vunpack.c.h.b16 %v452
    %v475 = vunpack.c.l.b16 %v453
    %v476 = vunpack.c.l.b16 %v454
    %v477 = vunpack.c.h.b16 %v453
    %v478 = vunpack.c.h.b16 %v454
    %v479 = vpack.c.b16 %v464, %v463
    %v480 = vpack.c.b16 %v466, %v465
    %v481 = vpack.c.b16 %v468, %v467
    %v482 = vpack.c.b16 %v470, %v469
    %v483 = vpack.c.b16 %v472, %v471
    %v484 = vpack.c.b16 %v474, %v473
    %v485 = vpack.c.b16 %v476, %v475
    %v486 = vpack.c.b16 %v478, %v477
    %s495 = scalar_lea.vmem [#allocation2], 64
    %496 = vst [vmem:[%s495] sm:$0xff] %v479
    %497 = vst [vmem:[%s495 + $0x8] sm:$0xff] %v480
    %498 = vst [vmem:[%s495 + $0x10] sm:$0xff] %v481
    %499 = vst [vmem:[%s495 + $0x18] sm:$0xff] %v482
    %500 = vst [vmem:[%s495 + $0x20] sm:$0xff] %v483
    %501 = vst [vmem:[%s495 + $0x28] sm:$0xff] %v484
    %502 = vst [vmem:[%s495 + $0x30] sm:$0xff] %v485
    %503 = vst [vmem:[%s495 + $0x38] sm:$0xff] %v486
    // Predicated region
    $region18: #{tpu_custom_call.1} parent=1 // pred_check
      _
    $region19: #{tpu_custom_call.1} parent=1 // pred_check_branch
      %505 = sbr.rel (0) target = $region21
    $region20: #{tpu_custom_call.1} parent=1 // pred_region
      %s507 = ssub.s32 2048, 2048
      %508 = vsyncadd [#allocation3], %s507
      %s509 = sshll.u32 [#allocation2], 4
      %s510 = int_to_ptr.vmem [resolvable:$true] %s509
      %515 = dma.vmem_to_hbm [thread:$0]  %s510, 2048, %s4, [#allocation3], 128, 128, 8
    $region21: #{tpu_custom_call.1} parent=1 // pred_fallthru
      _
    // Predicated region
    $region22: #{tpu_custom_call.1} parent=1 // pred_check
      _
    $region23: #{tpu_custom_call.1} parent=1 // pred_check_branch
      %517 = sbr.rel (0) target = $region25
    $region24: #{tpu_custom_call.1} parent=1 // pred_region
      %518 = dma.done [#allocation3], 2048
    $region25: #{tpu_custom_call.1} parent=1 // pred_fallthru
      _
    %519 = vsyncpa [#allocation3], 1

// kernel: tpu_custom_call.1
$region0: #{tpu_custom_call.1}
  #allocation0 [shape = 'u32[]', space=smem, size = 0x4, offset = 0x4, fixed_abs, tag = 'smem constant byte address 0x4 - core index']
  #allocation1 [shape = 'u32[144,128]{1,0:T(1,128)}', space=vmem, size = 0x12000, scoped, tag = 'internal scratch']
  %s0 = inlined_call_operand.vmem [shape: f32[2,32,256], index: 0, kind: input, shape index: {}]
  %s1 = inlined_call_operand.vmem [shape: bf16[64,32], index: 1, kind: input, shape index: {}]
  %s2 = inlined_call_operand.vmem [shape: f32[64,1], index: 2, kind: input, shape index: {}]
  %s3 = inlined_call_operand.vmem [shape: f32[64,1], index: 3, kind: input, shape index: {}]
  %s4 = inlined_call_operand.hbm [shape: bf16[2,64,256], index: 4, kind: output, shape index: {}]
  %s5 = sld [smem:[#allocation0]]
  $region26: #{tpu_custom_call.1} parent=0
    _
  %s7 = ssub.s32 1, %s5
  %s8 = scalar_select 0, %s7, %s5
  $region1: #{tpu_custom_call.1} parent=0
    #allocation2 [shape = 'u8[65536]{0}', space=vmem, size = 0x10000, scoped, tag = 'output window, operand 0, single buffered']
    #allocation3 [shape = 's32[1]{0}', space=sflag, size = 0x4, scoped, tag = 'scoped memory for tpu_custom_call.1']
    %9 = vsyncpa [#allocation3], 0
    // Predicated region
    $region2: #{tpu_custom_call.1} parent=1 // pred_check
      _
    $region3: #{tpu_custom_call.1} parent=1 // pred_check_branch
      %11 = sbr.rel (0) target = $region5
    $region4: #{tpu_custom_call.1} parent=1 // pred_region
      _
    $region5: #{tpu_custom_call.1} parent=1 // pred_fallthru
      _
    // Predicated region
    $region6: #{tpu_custom_call.1} parent=1 // pred_check
      _
    $region7: #{tpu_custom_call.1} parent=1 // pred_check_branch
      %13 = sbr.rel (0) target = $region9
    $region8: #{tpu_custom_call.1} parent=1 // pred_region
      _
    $region9: #{tpu_custom_call.1} parent=1 // pred_fallthru
      _
    // Predicated region
    $region10: #{tpu_custom_call.1} parent=1 // pred_check
      _
    $region11: #{tpu_custom_call.1} parent=1 // pred_check_branch
      %15 = sbr.rel (0) target = $region13
    $region12: #{tpu_custom_call.1} parent=1 // pred_region
      _
    $region13: #{tpu_custom_call.1} parent=1 // pred_fallthru
      _
    // Predicated region
    $region14: #{tpu_custom_call.1} parent=1 // pred_check
      _
    $region15: #{tpu_custom_call.1} parent=1 // pred_check_branch
      %17 = sbr.rel (0) target = $region17
    $region16: #{tpu_custom_call.1} parent=1 // pred_region
      _
    $region17: #{tpu_custom_call.1} parent=1 // pred_fallthru
      _
    %v19 = vld [vmem:[%s1] sm:$0xf]
    %v20 = vld [vmem:[%s1 + $0x4] sm:$0xf]
    %v21 = vld [vmem:[%s1 + $0x8] sm:$0xf]
    %v22 = vld [vmem:[%s1 + $0xc] sm:$0xf]
    %v23 = vld [vmem:[%s1 + $0x10] sm:$0xf]
    %v24 = vld [vmem:[%s1 + $0x14] sm:$0xf]
    %v25 = vld [vmem:[%s1 + $0x18] sm:$0xf]
    %v26 = vld [vmem:[%s1 + $0x1c] sm:$0xf]
    %v27 = vld [vmem:[%s2] sm:$0xff]
    %v28 = vld [vmem:[%s2 + $0x8] sm:$0xff]
    %v29 = vld [vmem:[%s2 + $0x10] sm:$0xff]
    %v30 = vld [vmem:[%s2 + $0x18] sm:$0xff]
    %v31 = vld [vmem:[%s2 + $0x20] sm:$0xff]
    %v32 = vld [vmem:[%s2 + $0x28] sm:$0xff]
    %v33 = vld [vmem:[%s2 + $0x30] sm:$0xff]
    %v34 = vld [vmem:[%s2 + $0x38] sm:$0xff]
    %v35 = vld [vmem:[%s3] sm:$0xff]
    %v36 = vld [vmem:[%s3 + $0x8] sm:$0xff]
    %v37 = vld [vmem:[%s3 + $0x10] sm:$0xff]
    %v38 = vld [vmem:[%s3 + $0x18] sm:$0xff]
    %v39 = vld [vmem:[%s3 + $0x20] sm:$0xff]
    %v40 = vld [vmem:[%s3 + $0x28] sm:$0xff]
    %v41 = vld [vmem:[%s3 + $0x30] sm:$0xff]
    %v42 = vld [vmem:[%s3 + $0x38] sm:$0xff]
    %v43 = vld [vmem:[%s0] sm:$0xff]
    %v44 = vld [vmem:[%s0 + $0x8] sm:$0xff]
    %v45 = vld [vmem:[%s0 + $0x10] sm:$0xff]
    %v46 = vld [vmem:[%s0 + $0x18] sm:$0xff]
    %v47 = vld [vmem:[%s0 + $0x20] sm:$0xff]
    %v48 = vld [vmem:[%s0 + $0x28] sm:$0xff]
    %v49 = vld [vmem:[%s0 + $0x30] sm:$0xff]
    %v50 = vld [vmem:[%s0 + $0x38] sm:$0xff]
    %v51 = vpack.c.bf16 %v45, %v43
    %v52 = vpack.c.bf16 %v46, %v44
    %v53 = vpack.c.bf16 %v49, %v47
    %v54 = vpack.c.bf16 %v50, %v48
    %v63 = vunpack.c.l.b16 %v19
    %v64 = vunpack.c.l.b16 %v20
    %v65 = vunpack.c.l.b16 %v21
    %v66 = vunpack.c.l.b16 %v22
    %v67 = vunpack.c.l.b16 %v23
    %v68 = vunpack.c.l.b16 %v24
    %v69 = vunpack.c.l.b16 %v25
    %v70 = vunpack.c.l.b16 %v26
    %v71 = vpack.c.b16 %v64, %v63
    %v72 = vpack.c.b16 %v66, %v65
    %v73 = vpack.c.b16 %v68, %v67
    %v74 = vpack.c.b16 %v70, %v69
    %vm75 = vcmask 261120
    %v77 = vsel %vm75, %v71, 0
    %v80 = vsel %vm75, %v72, 0
    %v83 = vsel %vm75, %v73, 0
    %v86 = vsel %vm75, %v74, 0
    %88 = vmatprep.subr.bf16.mxu0 0
    %89 = vmatpush1.bf16.msra.mxu0 0
    %90 = vmatprep.subr.bf16.mxu0 0
    %91 = vmatpush1.bf16.msra.mxu0 0
    %92 = vmatprep.subr.bf16.mxu0 0
    %93 = vmatpush1.bf16.msra.mxu0 0
    %94 = vmatprep.subr.bf16.mxu0 0
    %95 = vmatpush1.bf16.msra.mxu0 0
    %96 = vmatprep.subr.bf16.mxu0 0
    %97 = vmatpush1.bf16.msra.mxu0 0
    %98 = vmatprep.subr.bf16.mxu0 0
    %99 = vmatpush1.bf16.msra.mxu0 0
    %100 = vmatprep.subr.bf16.mxu0 %v54
    %101 = vmatpush1.bf16.msra.mxu0 %v53
    %102 = vmatprep.subr.bf16.mxu0 %v52
    %103 = vmatpush1.bf16.msra.mxu0 %v51
    %104 = vmatprep.subr.bf16.mxu0 0
    %105 = vmatpush2.bf16.msra.mxu0 0
    %106 = vmatprep.subr.bf16.mxu0 0
    %107 = vmatpush2.bf16.msra.mxu0 0
    %108 = vmatprep.subr.bf16.mxu0 0
    %109 = vmatpush2.bf16.msra.mxu0 0
    %110 = vmatprep.subr.bf16.mxu0 0
    %111 = vmatpush2.bf16.msra.mxu0 0
    %112 = vmatprep.subr.bf16.mxu0 0
    %113 = vmatpush2.bf16.msra.mxu0 0
    %114 = vmatprep.subr.bf16.mxu0 0
    %115 = vmatpush2.bf16.msra.mxu0 0
    %116 = vmatprep.subr.bf16.mxu0 0
    %117 = vmatpush2.bf16.msra.mxu0 0
    %118 = vmatprep.subr.bf16.mxu0 0
    %119 = vmatpush2.bf16.msra.mxu0 0
    %120 = vmatprep.mubr.bf16.mxu0 0
    %121 = vmatmul.mubr.bf16.gmra.mxu0 %v77
    %v122 = vpop.f32.mrf.mxu0
    %v123 = vadd.f32 0.0, %v122
    %v124 = vpop.f32.mrf.mxu0
    %v125 = vadd.f32 0.0, %v124
    %v126 = vpop.f32.mrf.mxu0
    %v127 = vadd.f32 0.0, %v126
    %v128 = vpop.f32.mrf.mxu0
    %v129 = vadd.f32 0.0, %v128
    %130 = vmatprep.mubr.bf16.mxu0 0
    %131 = vmatmul.mubr.bf16.gmra.mxu0 %v80
    %v132 = vpop.f32.mrf.mxu0
    %v133 = vadd.f32 0.0, %v132
    %v134 = vpop.f32.mrf.mxu0
    %v135 = vadd.f32 0.0, %v134
    %v136 = vpop.f32.mrf.mxu0
    %v137 = vadd.f32 0.0, %v136
    %v138 = vpop.f32.mrf.mxu0
    %v139 = vadd.f32 0.0, %v138
    %140 = vmatprep.mubr.bf16.mxu0 0
    %141 = vmatmul.mubr.bf16.gmra.mxu0 %v83
    %v142 = vpop.f32.mrf.mxu0
    %v143 = vadd.f32 0.0, %v142
    %v144 = vpop.f32.mrf.mxu0
    %v145 = vadd.f32 0.0, %v144
    %v146 = vpop.f32.mrf.mxu0
    %v147 = vadd.f32 0.0, %v146
    %v148 = vpop.f32.mrf.mxu0
    %v149 = vadd.f32 0.0, %v148
    %150 = vmatprep.mubr.bf16.mxu0 0
    %151 = vmatmul.mubr.bf16.gmra.mxu0 %v86
    %v152 = vpop.f32.mrf.mxu0
    %v153 = vadd.f32 0.0, %v152
    %v154 = vpop.f32.mrf.mxu0
    %v155 = vadd.f32 0.0, %v154
    %v156 = vpop.f32.mrf.mxu0
    %v157 = vadd.f32 0.0, %v156
    %v158 = vpop.f32.mrf.mxu0
    %v159 = vadd.f32 0.0, %v158
    %160 = vdwg.mxu0
    %162 = vset.pattern.permute.xlu0 0
    %163 = vperm.xlu0 %162, %v27
    %v164 = vpop.permute.xlu0 %163
    %167 = vset.pattern.permute.xlu0 0
    %168 = vperm.xlu0 %167, %v28
    %v169 = vpop.permute.xlu0 %168
    %172 = vset.pattern.permute.xlu0 0
    %173 = vperm.xlu0 %172, %v29
    %v174 = vpop.permute.xlu0 %173
    %177 = vset.pattern.permute.xlu0 0
    %178 = vperm.xlu0 %177, %v30
    %v179 = vpop.permute.xlu0 %178
    %182 = vset.pattern.permute.xlu0 0
    %183 = vperm.xlu0 %182, %v31
    %v184 = vpop.permute.xlu0 %183
    %187 = vset.pattern.permute.xlu0 0
    %188 = vperm.xlu0 %187, %v32
    %v189 = vpop.permute.xlu0 %188
    %192 = vset.pattern.permute.xlu0 0
    %193 = vperm.xlu0 %192, %v33
    %v194 = vpop.permute.xlu0 %193
    %197 = vset.pattern.permute.xlu0 0
    %198 = vperm.xlu0 %197, %v34
    %v199 = vpop.permute.xlu0 %198
    %v201 = vmul.f32 %v123, %v164
    %v202 = vmul.f32 %v125, %v164
    %v203 = vmul.f32 %v127, %v169
    %v204 = vmul.f32 %v129, %v169
    %v205 = vmul.f32 %v133, %v174
    %v206 = vmul.f32 %v135, %v174
    %v207 = vmul.f32 %v137, %v179
    %v208 = vmul.f32 %v139, %v179
    %v209 = vmul.f32 %v143, %v184
    %v210 = vmul.f32 %v145, %v184
    %v211 = vmul.f32 %v147, %v189
    %v212 = vmul.f32 %v149, %v189
    %v213 = vmul.f32 %v153, %v194
    %v214 = vmul.f32 %v155, %v194
    %v215 = vmul.f32 %v157, %v199
    %v216 = vmul.f32 %v159, %v199
    %218 = vset.pattern.permute.xlu0 0
    %219 = vperm.xlu0 %218, %v35
    %v220 = vpop.permute.xlu0 %219
    %223 = vset.pattern.permute.xlu0 0
    %224 = vperm.xlu0 %223, %v36
    %v225 = vpop.permute.xlu0 %224
    %228 = vset.pattern.permute.xlu0 0
    %229 = vperm.xlu0 %228, %v37
    %v230 = vpop.permute.xlu0 %229
    %233 = vset.pattern.permute.xlu0 0
    %234 = vperm.xlu0 %233, %v38
    %v235 = vpop.permute.xlu0 %234
    %238 = vset.pattern.permute.xlu0 0
    %239 = vperm.xlu0 %238, %v39
    %v240 = vpop.permute.xlu0 %239
    %243 = vset.pattern.permute.xlu0 0
    %244 = vperm.xlu0 %243, %v40
    %v245 = vpop.permute.xlu0 %244
    %248 = vset.pattern.permute.xlu0 0
    %249 = vperm.xlu0 %248, %v41
    %v250 = vpop.permute.xlu0 %249
    %253 = vset.pattern.permute.xlu0 0
    %254 = vperm.xlu0 %253, %v42
    %v255 = vpop.permute.xlu0 %254
    %v257 = vadd.f32 %v201, %v220
    %v258 = vadd.f32 %v202, %v220
    %v259 = vadd.f32 %v203, %v225
    %v260 = vadd.f32 %v204, %v225
    %v261 = vadd.f32 %v205, %v230
    %v262 = vadd.f32 %v206, %v230
    %v263 = vadd.f32 %v207, %v235
    %v264 = vadd.f32 %v208, %v235
    %v265 = vadd.f32 %v209, %v240
    %v266 = vadd.f32 %v210, %v240
    %v267 = vadd.f32 %v211, %v245
    %v268 = vadd.f32 %v212, %v245
    %v269 = vadd.f32 %v213, %v250
    %v270 = vadd.f32 %v214, %v250
    %v271 = vadd.f32 %v215, %v255
    %v272 = vadd.f32 %v216, %v255
    %v273 = vpack.c.bf16 %v259, %v257
    %v274 = vpack.c.bf16 %v260, %v258
    %v275 = vpack.c.bf16 %v263, %v261
    %v276 = vpack.c.bf16 %v264, %v262
    %v277 = vpack.c.bf16 %v267, %v265
    %v278 = vpack.c.bf16 %v268, %v266
    %v279 = vpack.c.bf16 %v271, %v269
    %v280 = vpack.c.bf16 %v272, %v270
    %v289 = vunpack.c.l.b16 %v273
    %v290 = vunpack.c.l.b16 %v274
    %v291 = vunpack.c.h.b16 %v273
    %v292 = vunpack.c.h.b16 %v274
    %v293 = vunpack.c.l.b16 %v275
    %v294 = vunpack.c.l.b16 %v276
    %v295 = vunpack.c.h.b16 %v275
    %v296 = vunpack.c.h.b16 %v276
    %v297 = vunpack.c.l.b16 %v277
    %v298 = vunpack.c.l.b16 %v278
    %v299 = vunpack.c.h.b16 %v277
    %v300 = vunpack.c.h.b16 %v278
    %v301 = vunpack.c.l.b16 %v279
    %v302 = vunpack.c.l.b16 %v280
    %v303 = vunpack.c.h.b16 %v279
    %v304 = vunpack.c.h.b16 %v280
    %v305 = vpack.c.b16 %v290, %v289
    %v306 = vpack.c.b16 %v292, %v291
    %v307 = vpack.c.b16 %v294, %v293
    %v308 = vpack.c.b16 %v296, %v295
    %v309 = vpack.c.b16 %v298, %v297
    %v310 = vpack.c.b16 %v300, %v299
    %v311 = vpack.c.b16 %v302, %v301
    %v312 = vpack.c.b16 %v304, %v303
    %321 = vst [vmem:[#allocation2] sm:$0xff] %v305
    %322 = vst [vmem:[#allocation2 + $0x8] sm:$0xff] %v306
    %323 = vst [vmem:[#allocation2 + $0x10] sm:$0xff] %v307
    %324 = vst [vmem:[#allocation2 + $0x18] sm:$0xff] %v308
    %325 = vst [vmem:[#allocation2 + $0x20] sm:$0xff] %v309
    %326 = vst [vmem:[#allocation2 + $0x28] sm:$0xff] %v310
    %327 = vst [vmem:[#allocation2 + $0x30] sm:$0xff] %v311
    %328 = vst [vmem:[#allocation2 + $0x38] sm:$0xff] %v312
    %s329 = scalar_lea.vmem %s0, 64
    %v330 = vld [vmem:[%s329] sm:$0xff]
    %v331 = vld [vmem:[%s329 + $0x8] sm:$0xff]
    %v332 = vld [vmem:[%s329 + $0x10] sm:$0xff]
    %v333 = vld [vmem:[%s329 + $0x18] sm:$0xff]
    %v334 = vld [vmem:[%s329 + $0x20] sm:$0xff]
    %v335 = vld [vmem:[%s329 + $0x28] sm:$0xff]
    %v336 = vld [vmem:[%s329 + $0x30] sm:$0xff]
    %v337 = vld [vmem:[%s329 + $0x38] sm:$0xff]
    %v338 = vpack.c.bf16 %v332, %v330
    %v339 = vpack.c.bf16 %v333, %v331
    %v340 = vpack.c.bf16 %v336, %v334
    %v341 = vpack.c.bf16 %v337, %v335
    %342 = vmatprep.subr.bf16.mxu0 0
    %343 = vmatpush1.bf16.msra.mxu0 0
    %344 = vmatprep.subr.bf16.mxu0 0
    %345 = vmatpush1.bf16.msra.mxu0 0
    %346 = vmatprep.subr.bf16.mxu0 0
    %347 = vmatpush1.bf16.msra.mxu0 0
    %348 = vmatprep.subr.bf16.mxu0 0
    %349 = vmatpush1.bf16.msra.mxu0 0
    %350 = vmatprep.subr.bf16.mxu0 0
    %351 = vmatpush1.bf16.msra.mxu0 0
    %352 = vmatprep.subr.bf16.mxu0 0
    %353 = vmatpush1.bf16.msra.mxu0 0
    %354 = vmatprep.subr.bf16.mxu0 %v341
    %355 = vmatpush1.bf16.msra.mxu0 %v340
    %356 = vmatprep.subr.bf16.mxu0 %v339
    %357 = vmatpush1.bf16.msra.mxu0 %v338
    %358 = vmatprep.subr.bf16.mxu0 0
    %359 = vmatpush2.bf16.msra.mxu0 0
    %360 = vmatprep.subr.bf16.mxu0 0
    %361 = vmatpush2.bf16.msra.mxu0 0
    %362 = vmatprep.subr.bf16.mxu0 0
    %363 = vmatpush2.bf16.msra.mxu0 0
    %364 = vmatprep.subr.bf16.mxu0 0
    %365 = vmatpush2.bf16.msra.mxu0 0
    %366 = vmatprep.subr.bf16.mxu0 0
    %367 = vmatpush2.bf16.msra.mxu0 0
    %368 = vmatprep.subr.bf16.mxu0 0
    %369 = vmatpush2.bf16.msra.mxu0 0
    %370 = vmatprep.subr.bf16.mxu0 0
    %371 = vmatpush2.bf16.msra.mxu0 0
    %372 = vmatprep.subr.bf16.mxu0 0
    %373 = vmatpush2.bf16.msra.mxu0 0
    %374 = vmatprep.mubr.bf16.mxu0 0
    %375 = vmatmul.mubr.bf16.gmra.mxu0 %v77
    %v376 = vpop.f32.mrf.mxu0
    %v377 = vadd.f32 0.0, %v376
    %v378 = vpop.f32.mrf.mxu0
    %v379 = vadd.f32 0.0, %v378
    %v380 = vpop.f32.mrf.mxu0
    %v381 = vadd.f32 0.0, %v380
    %v382 = vpop.f32.mrf.mxu0
    %v383 = vadd.f32 0.0, %v382
    %384 = vmatprep.mubr.bf16.mxu0 0
    %385 = vmatmul.mubr.bf16.gmra.mxu0 %v80
    %v386 = vpop.f32.mrf.mxu0
    %v387 = vadd.f32 0.0, %v386
    %v388 = vpop.f32.mrf.mxu0
    %v389 = vadd.f32 0.0, %v388
    %v390 = vpop.f32.mrf.mxu0
    %v391 = vadd.f32 0.0, %v390
    %v392 = vpop.f32.mrf.mxu0
    %v393 = vadd.f32 0.0, %v392
    %394 = vmatprep.mubr.bf16.mxu0 0
    %395 = vmatmul.mubr.bf16.gmra.mxu0 %v83
    %v396 = vpop.f32.mrf.mxu0
    %v397 = vadd.f32 0.0, %v396
    %v398 = vpop.f32.mrf.mxu0
    %v399 = vadd.f32 0.0, %v398
    %v400 = vpop.f32.mrf.mxu0
    %v401 = vadd.f32 0.0, %v400
    %v402 = vpop.f32.mrf.mxu0
    %v403 = vadd.f32 0.0, %v402
    %404 = vmatprep.mubr.bf16.mxu0 0
    %405 = vmatmul.mubr.bf16.gmra.mxu0 %v86
    %v406 = vpop.f32.mrf.mxu0
    %v407 = vadd.f32 0.0, %v406
    %v408 = vpop.f32.mrf.mxu0
    %v409 = vadd.f32 0.0, %v408
    %v410 = vpop.f32.mrf.mxu0
    %v411 = vadd.f32 0.0, %v410
    %v412 = vpop.f32.mrf.mxu0
    %v413 = vadd.f32 0.0, %v412
    %414 = vdwg.mxu0
    %v415 = vmul.f32 %v377, %v164
    %v416 = vmul.f32 %v379, %v164
    %v417 = vmul.f32 %v381, %v169
    %v418 = vmul.f32 %v383, %v169
    %v419 = vmul.f32 %v387, %v174
    %v420 = vmul.f32 %v389, %v174
    %v421 = vmul.f32 %v391, %v179
    %v422 = vmul.f32 %v393, %v179
    %v423 = vmul.f32 %v397, %v184
    %v424 = vmul.f32 %v399, %v184
    %v425 = vmul.f32 %v401, %v189
    %v426 = vmul.f32 %v403, %v189
    %v427 = vmul.f32 %v407, %v194
    %v428 = vmul.f32 %v409, %v194
    %v429 = vmul.f32 %v411, %v199
    %v430 = vmul.f32 %v413, %v199
    %v431 = vadd.f32 %v415, %v220
    %v432 = vadd.f32 %v416, %v220
    %v433 = vadd.f32 %v417, %v225
    %v434 = vadd.f32 %v418, %v225
    %v435 = vadd.f32 %v419, %v230
    %v436 = vadd.f32 %v420, %v230
    %v437 = vadd.f32 %v421, %v235
    %v438 = vadd.f32 %v422, %v235
    %v439 = vadd.f32 %v423, %v240
    %v440 = vadd.f32 %v424, %v240
    %v441 = vadd.f32 %v425, %v245
    %v442 = vadd.f32 %v426, %v245
    %v443 = vadd.f32 %v427, %v250
    %v444 = vadd.f32 %v428, %v250
    %v445 = vadd.f32 %v429, %v255
    %v446 = vadd.f32 %v430, %v255
    %v447 = vpack.c.bf16 %v433, %v431
    %v448 = vpack.c.bf16 %v434, %v432
    %v449 = vpack.c.bf16 %v437, %v435
    %v450 = vpack.c.bf16 %v438, %v436
    %v451 = vpack.c.bf16 %v441, %v439
    %v452 = vpack.c.bf16 %v442, %v440
    %v453 = vpack.c.bf16 %v445, %v443
    %v454 = vpack.c.bf16 %v446, %v444
    %v463 = vunpack.c.l.b16 %v447
    %v464 = vunpack.c.l.b16 %v448
    %v465 = vunpack.c.h.b16 %v447
    %v466 = vunpack.c.h.b16 %v448
    %v467 = vunpack.c.l.b16 %v449
    %v468 = vunpack.c.l.b16 %v450
    %v469 = vunpack.c.h.b16 %v449
    %v470 = vunpack.c.h.b16 %v450
    %v471 = vunpack.c.l.b16 %v451
    %v472 = vunpack.c.l.b16 %v452
    %v473 = vunpack.c.h.b16 %v451
    %v474 = vunpack.c.h.b16 %v452
    %v475 = vunpack.c.l.b16 %v453
    %v476 = vunpack.c.l.b16 %v454
    %v477 = vunpack.c.h.b16 %v453
    %v478 = vunpack.c.h.b16 %v454
    %v479 = vpack.c.b16 %v464, %v463
    %v480 = vpack.c.b16 %v466, %v465
    %v481 = vpack.c.b16 %v468, %v467
    %v482 = vpack.c.b16 %v470, %v469
    %v483 = vpack.c.b16 %v472, %v471
    %v484 = vpack.c.b16 %v474, %v473
    %v485 = vpack.c.b16 %v476, %v475
    %v486 = vpack.c.b16 %v478, %v477
    %s495 = scalar_lea.vmem [#allocation2], 64
    %496 = vst [vmem:[%s495] sm:$0xff] %v479
    %497 = vst [vmem:[%s495 + $0x8] sm:$0xff] %v480
    %498 = vst [vmem:[%s495 + $0x10] sm:$0xff] %v481
    %499 = vst [vmem:[%s495 + $0x18] sm:$0xff] %v482
    %500 = vst [vmem:[%s495 + $0x20] sm:$0xff] %v483
    %501 = vst [vmem:[%s495 + $0x28] sm:$0xff] %v484
    %502 = vst [vmem:[%s495 + $0x30] sm:$0xff] %v485
    %503 = vst [vmem:[%s495 + $0x38] sm:$0xff] %v486
    // Predicated region
    $region18: #{tpu_custom_call.1} parent=1 // pred_check
      _
    $region19: #{tpu_custom_call.1} parent=1 // pred_check_branch
      %505 = sbr.rel (0) target = $region21
    $region20: #{tpu_custom_call.1} parent=1 // pred_region
      %s507 = ssub.s32 2048, 2048
      %508 = vsyncadd [#allocation3], %s507
      %s509 = sshll.u32 [#allocation2], 4
      %s510 = int_to_ptr.vmem [resolvable:$true] %s509
      %515 = dma.vmem_to_hbm [thread:$0]  %s510, 2048, %s4, [#allocation3], 128, 128, 8
    $region21: #{tpu_custom_call.1} parent=1 // pred_fallthru
      _
    // Predicated region
    $region22: #{tpu_custom_call.1} parent=1 // pred_check
      _
    $region23: #{tpu_custom_call.1} parent=1 // pred_check_branch
      %517 = sbr.rel (0) target = $region25
    $region24: #{tpu_custom_call.1} parent=1 // pred_region
      %518 = dma.done [#allocation3], 2048
    $region25: #{tpu_custom_call.1} parent=1 // pred_fallthru
      _
    %519 = vsyncpa [#allocation3], 1

</llo_original>
